<compile_context>
chip_gen: v7x
topology: tpu7x:2x2x1
jax: 0.10.0
libtpu: 0.0.40
codegen_flags: <defaults>
</compile_context>

<pallas_src>
import jax
import jax.numpy as jnp
from jax.experimental import pallas as pl
from jax.experimental.pallas import tpu as pltpu

FOCAL_ALPHA = 0.25
FOCAL_GAMMA = 2.0          # fixed at 2 -> computed as an explicit square
POOL_K = 31
POOL_PAD = 15
_INV_POOL_AREA = 1.0 / float(POOL_K * POOL_K)


def _pick_strip(h):
    """Largest of (32, 16, 8) dividing h, else a single full-height pass."""
    for cand in (32, 16, 8):
        if h % cand == 0:
            return cand
    return h


def _make_kernel(bt, strip, n_strips, binary, square):
    def kernel(*refs):
        if square:
            pred_ref, mask_ref, ah_ref, out_ref = refs
            aw_ref = ah_ref           # H == W: the band matrix is symmetric; reuse it
        else:
            pred_ref, mask_ref, ah_ref, aw_ref, out_ref = refs

        mm_dtype = ah_ref.dtype       # bf16 when binary masks are assumed, else f32

        for i in range(bt):           # static unroll over the images in this block
            # F.avg_pool2d(mask, 31, stride=1, padding=15), count_include_pad=True:
            # separable box-sum  A_H @ m @ A_W  (band matrices), / 31*31.
            # bf16 operands are exact for binary masks; the intermediate row-sum is
            # an integer <= 31 so its bf16 cast is exact too.  f32 MXU accumulation.
            m_mm = mask_ref[i]                                          # (H, W)
            row = jnp.dot(ah_ref[...], m_mm, preferred_element_type=jnp.float32)
            pooled = jnp.dot(row.astype(mm_dtype), aw_ref[...],
                             preferred_element_type=jnp.float32) * _INV_POOL_AREA

            # Fused elementwise + reduction pass over row strips: nothing
            # weit-sized is materialized at full-image size.
            zero = jnp.zeros((1, 1), jnp.float32)
            w_sum, wf_sum, inter, sw_sum, mw_sum = zero, zero, zero, zero, zero

            for s in range(n_strips):
                r0 = s * strip
                sl = pl.ds(r0, strip)
                x = pred_ref[i, sl, :]                                  # f32 logits
                m = mask_ref[i, sl, :].astype(jnp.float32)
                pw = pooled[r0:r0 + strip, :]

                weit = 1.0 + 5.0 * jnp.abs(pw - m)

                # binary_cross_entropy_with_logits, reduction='none'
                #   bce = max(x,0) - x*m + log(1 + exp(-|x|))
                e = jnp.exp(-jnp.abs(x))
                bce = jnp.maximum(x, 0.0) - x * m + jnp.log(1.0 + e)

                # sigmoid from the same exp: approx reciprocal (free EUP slot)
                # + one Newton step on the VPU restores ~f32 accuracy.
                d = 1.0 + e
                r = pl.reciprocal(d, approx=True)
                r = r * (2.0 - d * r)
                sig = jnp.where(x >= 0.0, r, e * r)

                if binary:
                    # exp(-bce) == sigmoid (m==1) or 1-sigmoid (m==0): exact for
                    # {0,1} masks and saves one EUP exp per element.
                    pt = jnp.where(m > 0.5, sig, 1.0 - sig)
                else:
                    pt = jnp.exp(-bce)
                one_m_pt = 1.0 - pt
                focal = FOCAL_ALPHA * (one_m_pt * one_m_pt) * bce       # gamma == 2

                sig_w = sig * weit
                m_w = m * weit

                w_sum = w_sum + jnp.sum(weit, axis=(0, 1), keepdims=True)
                wf_sum = wf_sum + jnp.sum(focal * weit, axis=(0, 1), keepdims=True)
                inter = inter + jnp.sum(sig_w * m, axis=(0, 1), keepdims=True)
                sw_sum = sw_sum + jnp.sum(sig_w, axis=(0, 1), keepdims=True)
                mw_sum = mw_sum + jnp.sum(m_w, axis=(0, 1), keepdims=True)

            wfocal = wf_sum / w_sum
            union = sw_sum + mw_sum
            wiou = 1.0 - (inter + 1.0) / (union - inter + 1.0)
            loss = wfocal + wiou                                        # (1, 1)
            # lane-dense per-image scalar writeback over the (8, 128) tile
            out_ref[i] = jnp.broadcast_to(loss, out_ref.shape[1:])

    return kernel


def structure_loss_pallas(pred, mask, *, binary_mask=True):
    """pred, mask: (B, 1, H, W) float32. Returns scalar loss.

    binary_mask=True assumes the mask is strictly {0, 1}: the mask is DMA'd in
    bf16, pooling matmuls use bf16 operands (exact for binary masks) and the
    focal pt uses a sigmoid select.  For soft / non-binary masks pass
    binary_mask=False (f32 pooling, pt = exp(-bce)); the bf16 path is NOT exact
    for soft masks.
    """
    B, C, H, W = pred.shape
    assert C == 1, "StructureLoss expects single-channel predictions/masks"
    band_dtype = jnp.bfloat16 if binary_mask else jnp.float32
    p = pred.reshape(B, H, W).astype(jnp.float32)
    m = mask.reshape(B, H, W).astype(band_dtype if binary_mask else jnp.float32)

    # Banded summation matrices implementing the 31x31 box filter (separable).
    ih = jnp.arange(H)
    ah = (jnp.abs(ih[:, None] - ih[None, :]) <= POOL_PAD).astype(band_dtype)
    square = (H == W)
    if square:
        band_inputs = (ah,)
        band_specs = [pl.BlockSpec((H, H), lambda b: (0, 0))]
    else:
        iw = jnp.arange(W)
        aw = (jnp.abs(iw[:, None] - iw[None, :]) <= POOL_PAD).astype(band_dtype)
        band_inputs = (ah, aw)
        band_specs = [pl.BlockSpec((H, H), lambda b: (0, 0)),
                      pl.BlockSpec((W, W), lambda b: (0, 0))]
    band_itemsize = 2 if binary_mask else 4
    band_bytes = (H * H + (0 if square else W * W)) * band_itemsize

    # Generation-aware VMEM clamp: ~85% of physical capacity (128 MiB on
    # v5e/v6e, 64 MiB per TensorCore on v7x).
    try:
        phys_vmem = int(getattr(pltpu.get_tpu_info(), "vmem_capacity_bytes",
                                64 << 20))
    except Exception:
        phys_vmem = 64 << 20
    vmem_cap = int(phys_vmem * 0.85)

    strip = _pick_strip(H)
    n_strips = max(H // strip, 1)
    mask_itemsize = 2 if binary_mask else 4

    def needed_bytes(bt):
        return (bt * H * W * (2 * 4 + 2 * mask_itemsize)  # pred + mask, 2 bufs each
                + 2 * band_bytes                          # band matrices, 2 bufs
                + 2 * bt * 8 * 128 * 4                    # output tiles
                + 2 * H * W * 10                          # row / pooled matmul temps
                + 12 * strip * W * 4                      # strip-sized elementwise temps
                + (2 << 20))                              # slack

    # Pick Bt (images per grid step): largest divisor of B that fits VMEM,
    # preferring >= 2 grid steps so both v7x TensorCores get work.
    candidates = [d for d in (4, 3, 2, 1) if B % d == 0]
    fitting = [d for d in candidates if needed_bytes(d) <= vmem_cap]
    if not fitting:
        # TODO(synk): fall back to an H-tiled grid with a 15-row halo (or a
        # roll-and-add box sum) when a single image no longer fits the clamp
        # (relevant mostly for very large images on v7x's 64 MiB VMEM).
        bt = 1
    else:
        multi_step = [d for d in fitting if B // d >= 2]
        bt = max(multi_step) if multi_step else max(fitting)

    vmem_limit = int(min(max(needed_bytes(bt), 24 << 20), vmem_cap))

    # Note: the band-matrix blocks have a constant index_map so they would be
    # fine with a single pipeline buffer; the accounting above keeps the
    # default double-buffering honest instead.
    kernel = _make_kernel(bt, strip, n_strips, binary_mask, square)

    per_image = pl.pallas_call(
        kernel,
        out_shape=jax.ShapeDtypeStruct((B, 8, 128), jnp.float32),
        grid_spec=pltpu.PrefetchScalarGridSpec(
            num_scalar_prefetch=0,
            grid=(B // bt,),
            in_specs=[
                pl.BlockSpec((bt, H, W), lambda b: (b, 0, 0)),
                pl.BlockSpec((bt, H, W), lambda b: (b, 0, 0)),
                *band_specs,
            ],
            out_specs=pl.BlockSpec((bt, 8, 128), lambda b: (b, 0, 0)),
        ),
        compiler_params=pltpu.CompilerParams(
            dimension_semantics=("parallel",),
            vmem_limit_bytes=vmem_limit),
    )(p, m, *band_inputs)

    # per-image (wfocal + wiou) lives at [:, 0, 0]; final reduction is the mean
    return jnp.mean(per_image[:, 0, 0])


def structure_loss_ref(pred, mask, alpha=FOCAL_ALPHA, gamma=FOCAL_GAMMA):
    """Pure-JAX reference mirroring the PyTorch module."""
    pooled = jax.lax.reduce_window(
        mask, 0.0, jax.lax.add,
        window_dimensions=(1, 1, POOL_K, POOL_K),
        window_strides=(1, 1, 1, 1),
        padding=((0, 0), (0, 0), (POOL_PAD, POOL_PAD), (POOL_PAD, POOL_PAD)),
    ) / float(POOL_K * POOL_K)
    weit = 1.0 + 5.0 * jnp.abs(pooled - mask)
    bce = jnp.maximum(pred, 0.0) - pred * mask + jnp.log1p(jnp.exp(-jnp.abs(pred)))
    pt = jnp.exp(-bce)
    focal = alpha * (1.0 - pt) ** gamma * bce
    wfocal = (focal * weit).sum(axis=(2, 3)) / weit.sum(axis=(2, 3))
    sig = jax.nn.sigmoid(pred)
    inter = (sig * mask * weit).sum(axis=(2, 3))
    union = ((sig + mask) * weit).sum(axis=(2, 3))
    wiou = 1.0 - (inter + 1.0) / (union - inter + 1.0)
    return (wfocal + wiou).mean()


if __name__ == "__main__":
    key = jax.random.PRNGKey(0)
    k1, k2 = jax.random.split(key)
    B, C, H, W = 2, 1, 16, 16
    pred = jax.random.normal(k1, (B, C, H, W), dtype=jnp.float32)
    mask = (jax.random.uniform(k2, (B, C, H, W)) > 0.5).astype(jnp.float32)

    out = jax.block_until_ready(structure_loss_pallas(pred, mask))
    ref = jax.block_until_ready(structure_loss_ref(pred, mask))

    assert jnp.isfinite(out), "kernel produced non-finite loss"
    assert jnp.allclose(out, ref, rtol=1e-4, atol=1e-5), (out, ref)
    print("KERNEL_OK")
</pallas_src>

<mosaic_0001>
module attributes {stable_mosaic.version = 11 : i64} {
  func.func @kernel(%arg0: i32, %arg1: memref<1x16x16xf32, #tpu.memory_space<vmem>>, %arg2: memref<1x16x16xbf16, #tpu.memory_space<vmem>>, %arg3: memref<16x16xbf16, #tpu.memory_space<vmem>>, %arg4: memref<1x8x128xf32, #tpu.memory_space<vmem>>) attributes {dimension_semantics = [#tpu.dimension_semantics<parallel>], iteration_bounds = array<i64: 2>, scalar_prefetch = 0 : i64, scratch_operands = 0 : i64, tpu.core_type = #tpu.core_type<tc>, window_params = [{transform_indices = @transform_0, window_bounds = array<i64: 1, 16, 16>}, {transform_indices = @transform_1, window_bounds = array<i64: 1, 16, 16>}, {pipeline_mode = #tpu.pipeline_mode<synchronous>, transform_indices = @transform_2, window_bounds = array<i64: 16, 16>}, {transform_indices = @transform_3, window_bounds = array<i64: 1, 8, 128>}]} {
    %c0 = arith.constant 0 : index
    %c0_0 = arith.constant 0 : index
    %c0_1 = arith.constant 0 : index
    %0 = vector.load %arg2[%c0, %c0_0, %c0_1] : memref<1x16x16xbf16, #tpu.memory_space<vmem>>, vector<1x16x16xbf16>
    %1 = vector.shape_cast %0 : vector<1x16x16xbf16> to vector<16x16xbf16>
    %c0_2 = arith.constant 0 : index
    %c0_3 = arith.constant 0 : index
    %2 = vector.load %arg3[%c0_2, %c0_3] : memref<16x16xbf16, #tpu.memory_space<vmem>>, vector<16x16xbf16>
    %cst = arith.constant dense<0.000000e+00> : vector<16x16xf32>
    %3 = tpu.matmul %2, %1, %cst {dimension_numbers = #tpu.dot_dimension_numbers<[1], [0], [0], [1], [0, 0, 1, 1], [], []>} : vector<16x16xbf16>, vector<16x16xbf16>, vector<16x16xf32> -> vector<16x16xf32>
    %4 = arith.truncf %3 : vector<16x16xf32> to vector<16x16xbf16>
    %c0_4 = arith.constant 0 : index
    %c0_5 = arith.constant 0 : index
    %5 = vector.load %arg3[%c0_4, %c0_5] : memref<16x16xbf16, #tpu.memory_space<vmem>>, vector<16x16xbf16>
    %cst_6 = arith.constant dense<0.000000e+00> : vector<16x16xf32>
    %6 = tpu.matmul %4, %5, %cst_6 {dimension_numbers = #tpu.dot_dimension_numbers<[1], [0], [0], [1], [0, 0, 1, 1], [], []>} : vector<16x16xbf16>, vector<16x16xbf16>, vector<16x16xf32> -> vector<16x16xf32>
    %cst_7 = arith.constant 0.00104058278 : f32
    %7 = vector.broadcast %cst_7 : f32 to vector<16x16xf32>
    %8 = arith.mulf %6, %7 : vector<16x16xf32>
    %cst_8 = arith.constant 0.000000e+00 : f32
    %9 = vector.broadcast %cst_8 : f32 to vector<1x1xf32>
    %c0_9 = arith.constant 0 : index
    %c0_10 = arith.constant 0 : index
    %c0_11 = arith.constant 0 : index
    %10 = vector.load %arg1[%c0_9, %c0_10, %c0_11] : memref<1x16x16xf32, #tpu.memory_space<vmem>>, vector<1x16x16xf32>
    %11 = vector.shape_cast %10 : vector<1x16x16xf32> to vector<16x16xf32>
    %c0_12 = arith.constant 0 : index
    %c0_13 = arith.constant 0 : index
    %c0_14 = arith.constant 0 : index
    %12 = vector.load %arg2[%c0_12, %c0_13, %c0_14] : memref<1x16x16xbf16, #tpu.memory_space<vmem>>, vector<1x16x16xbf16>
    %13 = vector.shape_cast %12 : vector<1x16x16xbf16> to vector<16x16xbf16>
    %14 = arith.extf %13 : vector<16x16xbf16> to vector<16x16xf32>
    %15 = arith.subf %8, %14 : vector<16x16xf32>
    %16 = math.absf %15 : vector<16x16xf32>
    %cst_15 = arith.constant 5.000000e+00 : f32
    %17 = vector.broadcast %cst_15 : f32 to vector<16x16xf32>
    %18 = arith.mulf %17, %16 : vector<16x16xf32>
    %cst_16 = arith.constant 1.000000e+00 : f32
    %19 = vector.broadcast %cst_16 : f32 to vector<16x16xf32>
    %20 = arith.addf %19, %18 : vector<16x16xf32>
    %21 = math.absf %11 : vector<16x16xf32>
    %cst_17 = arith.constant 0.000000e+00 : f32
    %22 = vector.broadcast %cst_17 : f32 to vector<16x16xf32>
    %23 = arith.subf %22, %21 : vector<16x16xf32>
    %24 = math.exp %23 : vector<16x16xf32>
    %cst_18 = arith.constant 0.000000e+00 : f32
    %25 = vector.broadcast %cst_18 : f32 to vector<16x16xf32>
    %26 = arith.maximumf %11, %25 : vector<16x16xf32>
    %27 = arith.mulf %11, %14 : vector<16x16xf32>
    %28 = arith.subf %26, %27 : vector<16x16xf32>
    %cst_19 = arith.constant 1.000000e+00 : f32
    %29 = vector.broadcast %cst_19 : f32 to vector<16x16xf32>
    %30 = arith.addf %29, %24 : vector<16x16xf32>
    %31 = math.log %30 : vector<16x16xf32>
    %32 = arith.addf %28, %31 : vector<16x16xf32>
    %cst_20 = arith.constant 1.000000e+00 : f32
    %33 = vector.broadcast %cst_20 : f32 to vector<16x16xf32>
    %34 = arith.addf %33, %24 : vector<16x16xf32>
    %35 = tpu.reciprocal %34 {approx = true} : vector<16x16xf32> -> vector<16x16xf32>
    %36 = arith.mulf %34, %35 : vector<16x16xf32>
    %cst_21 = arith.constant 2.000000e+00 : f32
    %37 = vector.broadcast %cst_21 : f32 to vector<16x16xf32>
    %38 = arith.subf %37, %36 : vector<16x16xf32>
    %39 = arith.mulf %35, %38 : vector<16x16xf32>
    %cst_22 = arith.constant 0.000000e+00 : f32
    %40 = vector.broadcast %cst_22 : f32 to vector<16x16xf32>
    %41 = arith.cmpf oge, %11, %40 : vector<16x16xf32>
    %42 = arith.mulf %24, %39 : vector<16x16xf32>
    %43 = arith.select %41, %39, %42 : vector<16x16xi1>, vector<16x16xf32>
    %cst_23 = arith.constant 5.000000e-01 : f32
    %44 = vector.broadcast %cst_23 : f32 to vector<16x16xf32>
    %45 = arith.cmpf ogt, %14, %44 : vector<16x16xf32>
    %cst_24 = arith.constant 1.000000e+00 : f32
    %46 = vector.broadcast %cst_24 : f32 to vector<16x16xf32>
    %47 = arith.subf %46, %43 : vector<16x16xf32>
    %48 = arith.select %45, %43, %47 : vector<16x16xi1>, vector<16x16xf32>
    %cst_25 = arith.constant 1.000000e+00 : f32
    %49 = vector.broadcast %cst_25 : f32 to vector<16x16xf32>
    %50 = arith.subf %49, %48 : vector<16x16xf32>
    %51 = arith.mulf %50, %50 : vector<16x16xf32>
    %cst_26 = arith.constant 2.500000e-01 : f32
    %52 = vector.broadcast %cst_26 : f32 to vector<16x16xf32>
    %53 = arith.mulf %52, %51 : vector<16x16xf32>
    %54 = arith.mulf %53, %32 : vector<16x16xf32>
    %55 = arith.mulf %43, %20 : vector<16x16xf32>
    %56 = arith.mulf %14, %20 : vector<16x16xf32>
    %57 = vector.shape_cast %20 : vector<16x16xf32> to vector<1x16x16xf32>
    %cst_27 = arith.constant dense<0.000000e+00> : vector<1xf32>
    %58 = vector.multi_reduction <add>, %57, %cst_27 [1, 2] : vector<1x16x16xf32> to vector<1xf32>
    %59 = vector.shape_cast %58 : vector<1xf32> to vector<1x1x1xf32>
    %60 = vector.extract %59[0, 0, 0] : f32 from vector<1x1x1xf32>
    %61 = vector.broadcast %60 : f32 to vector<1x1xf32>
    %62 = arith.addf %9, %61 : vector<1x1xf32>
    %63 = arith.mulf %54, %20 : vector<16x16xf32>
    %64 = vector.shape_cast %63 : vector<16x16xf32> to vector<1x16x16xf32>
    %cst_28 = arith.constant dense<0.000000e+00> : vector<1xf32>
    %65 = vector.multi_reduction <add>, %64, %cst_28 [1, 2] : vector<1x16x16xf32> to vector<1xf32>
    %66 = vector.shape_cast %65 : vector<1xf32> to vector<1x1x1xf32>
    %67 = vector.extract %66[0, 0, 0] : f32 from vector<1x1x1xf32>
    %68 = vector.broadcast %67 : f32 to vector<1x1xf32>
    %69 = arith.addf %9, %68 : vector<1x1xf32>
    %70 = arith.mulf %55, %14 : vector<16x16xf32>
    %71 = vector.shape_cast %70 : vector<16x16xf32> to vector<1x16x16xf32>
    %cst_29 = arith.constant dense<0.000000e+00> : vector<1xf32>
    %72 = vector.multi_reduction <add>, %71, %cst_29 [1, 2] : vector<1x16x16xf32> to vector<1xf32>
    %73 = vector.shape_cast %72 : vector<1xf32> to vector<1x1x1xf32>
    %74 = vector.extract %73[0, 0, 0] : f32 from vector<1x1x1xf32>
    %75 = vector.broadcast %74 : f32 to vector<1x1xf32>
    %76 = arith.addf %9, %75 : vector<1x1xf32>
    %77 = vector.shape_cast %55 : vector<16x16xf32> to vector<1x16x16xf32>
    %cst_30 = arith.constant dense<0.000000e+00> : vector<1xf32>
    %78 = vector.multi_reduction <add>, %77, %cst_30 [1, 2] : vector<1x16x16xf32> to vector<1xf32>
    %79 = vector.shape_cast %78 : vector<1xf32> to vector<1x1x1xf32>
    %80 = vector.extract %79[0, 0, 0] : f32 from vector<1x1x1xf32>
    %81 = vector.broadcast %80 : f32 to vector<1x1xf32>
    %82 = arith.addf %9, %81 : vector<1x1xf32>
    %83 = vector.shape_cast %56 : vector<16x16xf32> to vector<1x16x16xf32>
    %cst_31 = arith.constant dense<0.000000e+00> : vector<1xf32>
    %84 = vector.multi_reduction <add>, %83, %cst_31 [1, 2] : vector<1x16x16xf32> to vector<1xf32>
    %85 = vector.shape_cast %84 : vector<1xf32> to vector<1x1x1xf32>
    %86 = vector.extract %85[0, 0, 0] : f32 from vector<1x1x1xf32>
    %87 = vector.broadcast %86 : f32 to vector<1x1xf32>
    %88 = arith.addf %9, %87 : vector<1x1xf32>
    %89 = arith.divf %69, %62 : vector<1x1xf32>
    %90 = arith.addf %82, %88 : vector<1x1xf32>
    %cst_32 = arith.constant 1.000000e+00 : f32
    %91 = vector.broadcast %cst_32 : f32 to vector<1x1xf32>
    %92 = arith.addf %76, %91 : vector<1x1xf32>
    %93 = arith.subf %90, %76 : vector<1x1xf32>
    %cst_33 = arith.constant 1.000000e+00 : f32
    %94 = vector.broadcast %cst_33 : f32 to vector<1x1xf32>
    %95 = arith.addf %93, %94 : vector<1x1xf32>
    %96 = arith.divf %92, %95 : vector<1x1xf32>
    %cst_34 = arith.constant 1.000000e+00 : f32
    %97 = vector.broadcast %cst_34 : f32 to vector<1x1xf32>
    %98 = arith.subf %97, %96 : vector<1x1xf32>
    %99 = arith.addf %89, %98 : vector<1x1xf32>
    %100 = vector.shape_cast %99 : vector<1x1xf32> to vector<1x1xf32>
    %101 = vector.broadcast %100 : vector<1x1xf32> to vector<8x128xf32>
    %c0_35 = arith.constant 0 : index
    %c0_36 = arith.constant 0 : index
    %c0_37 = arith.constant 0 : index
    %102 = vector.load %arg4[%c0_35, %c0_36, %c0_37] : memref<1x8x128xf32, #tpu.memory_space<vmem>>, vector<1x8x128xf32>
    %103 = vector.shape_cast %102 : vector<1x8x128xf32> to vector<8x128xf32>
    %104 = vector.shape_cast %101 : vector<8x128xf32> to vector<1x8x128xf32>
    tpu.vector_store %arg4[%c0_35, %c0_36, %c0_37], %104 {strides = array<i32>} : memref<1x8x128xf32, #tpu.memory_space<vmem>>, vector<1x8x128xf32>,
    return
  }
  func.func @transform_0(%arg0: i32) -> (i32, i32, i32) {
    %c0_i32 = arith.constant 0 : i32
    %c0_i32_0 = arith.constant 0 : i32
    %c0_i32_1 = arith.constant 0 : i32
    return %arg0, %c0_i32, %c0_i32_0 : i32, i32, i32
  }
  func.func @transform_1(%arg0: i32) -> (i32, i32, i32) {
    %c0_i32 = arith.constant 0 : i32
    %c0_i32_0 = arith.constant 0 : i32
    %c0_i32_1 = arith.constant 0 : i32
    return %arg0, %c0_i32, %c0_i32_0 : i32, i32, i32
  }
  func.func @transform_2(%arg0: i32) -> (i32, i32) {
    %c0_i32 = arith.constant 0 : i32
    %c0_i32_0 = arith.constant 0 : i32
    %c0_i32_1 = arith.constant 0 : i32
    return %c0_i32, %c0_i32_0 : i32, i32
  }
  func.func @transform_3(%arg0: i32) -> (i32, i32, i32) {
    %c0_i32 = arith.constant 0 : i32
    %c0_i32_0 = arith.constant 0 : i32
    %c0_i32_1 = arith.constant 0 : i32
    return %arg0, %c0_i32, %c0_i32_0 : i32, i32, i32
  }
}

</mosaic_0001>

<llo_original>
// kernel: tpu_custom_call.1
$region0: #{tpu_custom_call.1}
  #allocation0 [shape = 'u32[]', space=smem, size = 0x4, offset = 0x4, fixed_abs, tag = 'smem constant byte address 0x4 - core index']
  #allocation1 [shape = 'u32[144,128]{1,0:T(1,128)}', space=vmem, size = 0x12000, scoped, tag = 'internal scratch']
  %s0 = inlined_call_operand.hbm [shape: f32[2,16,16], index: 0, kind: input, shape index: {}]
  %s1 = inlined_call_operand.hbm [shape: bf16[2,16,16], index: 1, kind: input, shape index: {}]
  %s2 = inlined_call_operand.hbm [shape: bf16[16,16], index: 2, kind: input, shape index: {}]
  %s3 = inlined_call_operand.hbm [shape: f32[2,8,128], index: 3, kind: output, shape index: {}]
  %s4 = sld [smem:[#allocation0]]
  $region57: #{tpu_custom_call.1} parent=0
    _
  %s6 = ssub.s32 1, %s4
  %s7 = scalar_select 0, %s6, %s4
  $region1: #{tpu_custom_call.1} parent=0
    #allocation2 [shape = 'u8[16384]{0}', space=vmem, size = 0x4000, scoped, tag = 'input window, operand 0']
    #allocation3 [shape = 's32[2]{0}', space=sflag, size = 0x8, scoped, tag = 'scoped memory for tpu_custom_call.1']
    #allocation4 [shape = 's32[2]{0}', space=sflag, size = 0x8, scoped, tag = 'scoped memory for tpu_custom_call.1']
    #allocation5 [shape = 'u8[8192]{0}', space=vmem, size = 0x2000, scoped, tag = 'input window, operand 1']
    #allocation6 [shape = 's32[2]{0}', space=sflag, size = 0x8, scoped, tag = 'scoped memory for tpu_custom_call.1']
    #allocation7 [shape = 'u8[4096]{0}', space=vmem, size = 0x1000, scoped, tag = 'input window, operand 2, single buffered']
    #allocation8 [shape = 'u8[8192]{0}', space=vmem, size = 0x2000, scoped, tag = 'output window, operand 0']
    %8 = vsyncpa [#allocation3], 0
    %s9 = scalar_lea.sflag [#allocation3], 1
    %10 = vsyncpa %s9, 0
    %11 = vsyncpa [#allocation6], 0
    %s12 = scalar_lea.sflag [#allocation6], 1
    %13 = vsyncpa %s12, 0
    %14 = vsyncpa [#allocation4], 0
    %s15 = scalar_lea.sflag [#allocation4], 1
    %16 = vsyncpa %s15, 0
    loop: start=0, step=1, limit=4
    $region2: #{tpu_custom_call.1} parent=1 // loop_pre_header
      _
    $region3: #{tpu_custom_call.1} parent=1 // loop_header
      %s18 = sphi 0, %s22
      %p19 = scmp.ge.s32.totalorder %s18, 4
      %s28 = sphi 0, %s30
      %s31 = sphi 0, %s28
      %s32 = sphi 0, %s31
      %s48 = sphi 0, %s32
      %s54 = sphi 0, %s56
      %s57 = sphi 0, %s54
      %s58 = sphi 0, %s57
      %s74 = sphi 0, %s58
      %s78 = sphi 0, %s78
      %s80 = sphi 0, %s78
      %s81 = sphi 0, %s80
      %s95 = sphi 0, %s81
      %s101 = sphi 0, %s103
      %s104 = sphi 0, %s101
      %s105 = sphi 0, %s104
      %s121 = sphi 0, %s105
    $region4: #{tpu_custom_call.1} parent=1 // loop_header_branch
      %21 = sbr.rel (%p19) target = $region8
    $region5: #{tpu_custom_call.1} parent=1 // loop_body
      %s23 = ssub.s32 %s18, 1
      %s24 = ssub.s32 %s18, 2
      %s25 = sadd.s32 %s18, 1
      %s26 = ssub.s32 %s18, %s25
      %p27 = scmp.eq.s32.totalorder %s26, 0
      %s29 = sadd.s32 %s28, 1
      %s30 = scalar_select %p27, %s28, %s29
      %p33 = pneg %p27
      %p34 = scmp.eq.s32.totalorder %s18, 1
      %p35 = por %p33, %p34
      %p36 = scmp.ne.s32.totalorder %s28, %s31
      %p37 = scmp.eq.s32.totalorder %s18, 0
      %p38 = por %p36, %p37
      %p39 = scmp.ne.s32.totalorder %s28, %s31
      %p40 = scmp.eq.s32.totalorder %s23, 1
      %p41 = por %p39, %p40
      %p42 = scmp.ne.s32.totalorder %s31, %s32
      %p43 = scmp.eq.s32.totalorder %s23, 0
      %p44 = por %p42, %p43
      %p45 = scmp.ne.s32.totalorder %s31, %s32
      %p46 = scmp.eq.s32.totalorder %s24, 1
      %p47 = por %p45, %p46
      %p49 = scmp.ne.s32.totalorder %s32, %s48
      %p50 = scmp.eq.s32.totalorder %s24, 0
      %p51 = por %p49, %p50
      %s52 = ssub.s32 %s18, %s25
      %p53 = scmp.eq.s32.totalorder %s52, 0
      %s55 = sadd.s32 %s54, 1
      %s56 = scalar_select %p53, %s54, %s55
      %p59 = pneg %p53
      %p60 = scmp.eq.s32.totalorder %s18, 1
      %p61 = por %p59, %p60
      %p62 = scmp.ne.s32.totalorder %s54, %s57
      %p63 = scmp.eq.s32.totalorder %s18, 0
      %p64 = por %p62, %p63
      %p65 = scmp.ne.s32.totalorder %s54, %s57
      %p66 = scmp.eq.s32.totalorder %s23, 1
      %p67 = por %p65, %p66
      %p68 = scmp.ne.s32.totalorder %s57, %s58
      %p69 = scmp.eq.s32.totalorder %s23, 0
      %p70 = por %p68, %p69
      %p71 = scmp.ne.s32.totalorder %s57, %s58
      %p72 = scmp.eq.s32.totalorder %s24, 1
      %p73 = por %p71, %p72
      %p75 = scmp.ne.s32.totalorder %s58, %s74
      %p76 = scmp.eq.s32.totalorder %s24, 0
      %p77 = por %p75, %p76
      %s79 = sadd.s32 %s78, 1
      %p82 = scmp.eq.s32.totalorder %s18, 1
      %p83 = scmp.ne.s32.totalorder %s78, %s80
      %p84 = scmp.eq.s32.totalorder %s18, 0
      %p85 = por %p83, %p84
      %p86 = scmp.ne.s32.totalorder %s78, %s80
      %p87 = scmp.eq.s32.totalorder %s23, 1
      %p88 = por %p86, %p87
      %p89 = scmp.ne.s32.totalorder %s80, %s81
      %p90 = scmp.eq.s32.totalorder %s23, 0
      %p91 = por %p89, %p90
      %p92 = scmp.ne.s32.totalorder %s80, %s81
      %p93 = scmp.eq.s32.totalorder %s24, 1
      %p94 = por %p92, %p93
      %p96 = scmp.ne.s32.totalorder %s81, %s95
      %p97 = scmp.eq.s32.totalorder %s24, 0
      %p98 = por %p96, %p97
      %s99 = ssub.s32 %s18, %s25
      %p100 = scmp.eq.s32.totalorder %s99, 0
      %s102 = sadd.s32 %s101, 1
      %s103 = scalar_select %p100, %s101, %s102
      %p106 = pneg %p100
      %p107 = scmp.eq.s32.totalorder %s18, 1
      %p108 = por %p106, %p107
      %p109 = scmp.ne.s32.totalorder %s101, %s104
      %p110 = scmp.eq.s32.totalorder %s18, 0
      %p111 = por %p109, %p110
      %p112 = scmp.ne.s32.totalorder %s101, %s104
      %p113 = scmp.eq.s32.totalorder %s23, 1
      %p114 = por %p112, %p113
      %p115 = scmp.ne.s32.totalorder %s104, %s105
      %p116 = scmp.eq.s32.totalorder %s23, 0
      %p117 = por %p115, %p116
      %p118 = scmp.ne.s32.totalorder %s104, %s105
      %p119 = scmp.eq.s32.totalorder %s24, 1
      %p120 = por %p118, %p119
      %p122 = scmp.ne.s32.totalorder %s105, %s121
      %p123 = scmp.eq.s32.totalorder %s24, 0
      %p124 = por %p122, %p123
      %p125 = scmp.le.s32.totalorder 1, %s18
      %p126 = scmp.lt.s32.totalorder %s18, 3
      %p127 = pnand %p125, %p126
      %p128 = pneg %p127
      // Predicated region
      $region9: #{tpu_custom_call.1} parent=5 // pred_check
        _
      $region10: #{tpu_custom_call.1} parent=5 // pred_check_branch
        %130 = sbr.rel (%p127) target = $region12
      $region11: #{tpu_custom_call.1} parent=5 // pred_region
        %s131 = ssub.s32 %s18, 1
        // Predicated region
        $region13: #{tpu_custom_call.1} parent=11 // pred_check
          %p132 = pneg %p91
        $region14: #{tpu_custom_call.1} parent=11 // pred_check_branch
          %134 = sbr.rel (%p132) target = $region16
        $region15: #{tpu_custom_call.1} parent=11 // pred_region
          %s136 = ssub.s32 128, 128
          %137 = vsyncadd [#allocation6], %s136
          %s138 = sshll.u32 [#allocation7], 4
          %s139 = int_to_ptr.vmem [resolvable:$true] %s138
          %144 = dma.hbm_to_vmem [thread:$0]  %s2, 128, %s139, [#allocation6], 64, 64, 4
        $region16: #{tpu_custom_call.1} parent=11 // pred_fallthru
          _
      $region12: #{tpu_custom_call.1} parent=5 // pred_fallthru
        _
      %p145 = scmp.lt.s32.totalorder %s18, 2
      // Predicated region
      $region17: #{tpu_custom_call.1} parent=5 // pred_check
        %p146 = pneg %p145
      $region18: #{tpu_custom_call.1} parent=5 // pred_check_branch
        %148 = sbr.rel (%p146) target = $region20
      $region19: #{tpu_custom_call.1} parent=5 // pred_region
        // Predicated region
        $region21: #{tpu_custom_call.1} parent=19 // pred_check
          %p149 = pneg %p38
        $region22: #{tpu_custom_call.1} parent=19 // pred_check_branch
          %151 = sbr.rel (%p149) target = $region24
        $region23: #{tpu_custom_call.1} parent=19 // pred_region
          %s152 = sand.u32 %s28, 1
          %s153 = scalar_lea.sflag [#allocation3], %s152
          %s154 = sand.u32 %s28, 1
          %s155 = smul.addr %s154, 16
          %s156 = scalar_lea.vmem [#allocation2], %s155
          %s158 = ssub.s32 256, 256
          %159 = vsyncadd %s153, %s158
          %s160 = smul.addr %s18, 2
          %s161 = smul.addr %s160, 128
          %s162 = scalar_lea.hbm %s0, %s161
          %s163 = sshll.u32 %s156, 4
          %s164 = int_to_ptr.vmem [resolvable:$true] %s163
          %169 = dma.hbm_to_vmem [thread:$0]  %s162, 256, %s164, %s153, 128, 128, 8
        $region24: #{tpu_custom_call.1} parent=19 // pred_fallthru
          _
        // Predicated region
        $region25: #{tpu_custom_call.1} parent=19 // pred_check
          %p170 = pneg %p64
        $region26: #{tpu_custom_call.1} parent=19 // pred_check_branch
          %172 = sbr.rel (%p170) target = $region28
        $region27: #{tpu_custom_call.1} parent=19 // pred_region
          %s173 = sand.u32 %s18, 1
          %s174 = scalar_lea.sflag [#allocation6], %s173
          %s175 = sand.u32 %s54, 1
          %s176 = smul.addr %s175, 8
          %s177 = scalar_lea.vmem [#allocation5], %s176
          %s179 = ssub.s32 128, 128
          %180 = vsyncadd %s174, %s179
          %s181 = smul.addr %s18, 2
          %s182 = smul.addr %s181, 64
          %s183 = scalar_lea.hbm %s1, %s182
          %s184 = sshll.u32 %s177, 4
          %s185 = int_to_ptr.vmem [resolvable:$true] %s184
          %190 = dma.hbm_to_vmem [thread:$0]  %s183, 128, %s185, %s174, 64, 64, 4
        $region28: #{tpu_custom_call.1} parent=19 // pred_fallthru
          _
      $region20: #{tpu_custom_call.1} parent=5 // pred_fallthru
        _
      %p191 = scmp.le.s32.totalorder 1, %s18
      %p192 = scmp.lt.s32.totalorder %s18, 3
      %p193 = pnand %p191, %p192
      %p194 = pneg %p193
      // Predicated region
      $region29: #{tpu_custom_call.1} parent=5 // pred_check
        _
      $region30: #{tpu_custom_call.1} parent=5 // pred_check_branch
        %196 = sbr.rel (%p193) target = $region32
      $region31: #{tpu_custom_call.1} parent=5 // pred_region
        %s197 = ssub.s32 %s18, 1
        %s198 = sand.u32 %s31, 1
        %s199 = scalar_lea.sflag [#allocation3], %s198
        %s200 = sand.u32 %s31, 1
        %s201 = smul.addr %s200, 16
        %s202 = scalar_lea.vmem [#allocation2], %s201
        // Predicated region
        $region33: #{tpu_custom_call.1} parent=31 // pred_check
          %p203 = pneg %p44
        $region34: #{tpu_custom_call.1} parent=31 // pred_check_branch
          %205 = sbr.rel (%p203) target = $region36
        $region35: #{tpu_custom_call.1} parent=31 // pred_region
          %206 = dma.done %s199, 256
        $region36: #{tpu_custom_call.1} parent=31 // pred_fallthru
          _
        %s207 = sand.u32 %s23, 1
        %s208 = scalar_lea.sflag [#allocation6], %s207
        %s209 = sand.u32 %s57, 1
        %s210 = smul.addr %s209, 8
        %s211 = scalar_lea.vmem [#allocation5], %s210
        // Predicated region
        $region37: #{tpu_custom_call.1} parent=31 // pred_check
          %p212 = pneg %p70
        $region38: #{tpu_custom_call.1} parent=31 // pred_check_branch
          %214 = sbr.rel (%p212) target = $region40
        $region39: #{tpu_custom_call.1} parent=31 // pred_region
          %215 = dma.done %s208, 128
        $region40: #{tpu_custom_call.1} parent=31 // pred_fallthru
          _
        // Predicated region
        $region41: #{tpu_custom_call.1} parent=31 // pred_check
          %p216 = pneg %p91
        $region42: #{tpu_custom_call.1} parent=31 // pred_check_branch
          %218 = sbr.rel (%p216) target = $region44
        $region43: #{tpu_custom_call.1} parent=31 // pred_region
          %219 = dma.done [#allocation6], 128
        $region44: #{tpu_custom_call.1} parent=31 // pred_fallthru
          _
        %s220 = sand.u32 %s31, 1
        %s221 = scalar_lea.sflag [#allocation3], %s220
        %s222 = sand.u32 %s31, 1
        %s223 = smul.addr %s222, 16
        %s224 = scalar_lea.vmem [#allocation2], %s223
        %p225 = pneg %p44
        %p226 = pneg %p41
        %s227 = sand.u32 %s23, 1
        %s228 = scalar_lea.sflag [#allocation6], %s227
        %s229 = sand.u32 %s57, 1
        %s230 = smul.addr %s229, 8
        %s231 = scalar_lea.vmem [#allocation5], %s230
        %p232 = pneg %p70
        %p233 = pneg %p67
        %p234 = pneg %p91
        %p235 = pneg %p88
        %p236 = pneg %p117
        %p237 = pneg %p114
        %s238 = sand.u32 %s104, 1
        %s239 = scalar_lea.sflag [#allocation4], %s238
        %s240 = sand.u32 %s104, 1
        %s241 = smul.addr %s240, 8
        %s242 = scalar_lea.vmem [#allocation8], %s241
        %v244 = vld [vmem:[%s211] sm:$0xf]
        %v245 = vld [vmem:[%s211 + $0x4] sm:$0xf]
        %v246 = vld [vmem:[#allocation7] sm:$0xf]
        %v247 = vld [vmem:[#allocation7 + $0x4] sm:$0xf]
        %v250 = vunpack.c.l.b16 %v246
        %v251 = vunpack.c.l.b16 %v247
        %v252 = vpack.c.b16 %v251, %v250
        %v255 = vunpack.c.l.b16 %v244
        %v256 = vunpack.c.l.b16 %v245
        %v257 = vpack.c.b16 %v256, %v255
        %vm259 = vcmask 130048
        %v261 = vsel %vm259, %v252, 0
        %263 = vmatprep.subr.bf16.mxu0 0
        %264 = vmatpush1.bf16.msra.mxu0 %v257
        %265 = vmatprep.subr.bf16.mxu0 0
        %266 = vmatpush1.bf16.msra.mxu0 0
        %267 = vmatprep.subr.bf16.mxu0 0
        %268 = vmatpush1.bf16.msra.mxu0 0
        %269 = vmatprep.subr.bf16.mxu0 0
        %270 = vmatpush1.bf16.msra.mxu0 0
        %271 = vmatprep.subr.bf16.mxu0 0
        %272 = vmatpush1.bf16.msra.mxu0 0
        %273 = vmatprep.subr.bf16.mxu0 0
        %274 = vmatpush1.bf16.msra.mxu0 0
        %275 = vmatprep.subr.bf16.mxu0 0
        %276 = vmatpush1.bf16.msra.mxu0 0
        %277 = vmatprep.subr.bf16.mxu0 0
        %278 = vmatpush1.bf16.msra.mxu0 0
        %279 = vmatprep.subr.bf16.mxu0 0
        %280 = vmatpush1.bf16.msra.mxu0 0
        %281 = vmatprep.subr.bf16.mxu0 0
        %282 = vmatpush1.bf16.msra.mxu0 0
        %283 = vmatprep.subr.bf16.mxu0 0
        %284 = vmatpush1.bf16.msra.mxu0 0
        %285 = vmatprep.subr.bf16.mxu0 0
        %286 = vmatpush1.bf16.msra.mxu0 0
        %287 = vmatprep.subr.bf16.mxu0 0
        %288 = vmatpush1.bf16.msra.mxu0 0
        %289 = vmatprep.subr.bf16.mxu0 0
        %290 = vmatpush1.bf16.msra.mxu0 0
        %291 = vmatprep.subr.bf16.mxu0 0
        %292 = vmatpush1.bf16.msra.mxu0 0
        %293 = vmatprep.subr.bf16.mxu0 0
        %294 = vmatpush1.bf16.msra.mxu0 0
        %295 = vmatprep.mubr.bf16.mxu0 0
        %296 = vmatmul.mubr.bf16.gmra.mrb[0].mxu0 %v261
        %v297 = vpop.f32.mrb[0].mxu0
        %v298 = vadd.f32 0.0, %v297
        %v299 = vpop.f32.mrb[0].mxu0
        %v300 = vpop.f32.mrb[0].mxu0
        %v301 = vadd.f32 0.0, %v300
        %v302 = vpop.f32.mrb[0].mxu0
        %303 = vdwg.mxu0
        %v304 = vpack.c.bf16 %v301, %v298
        %v307 = vsel %vm259, %v304, 0
        %309 = vmatprep.subr.bf16.mxu0 0
        %310 = vmatpush1.bf16.msra.mxu0 %v252
        %311 = vmatprep.subr.bf16.mxu0 0
        %312 = vmatpush1.bf16.msra.mxu0 0
        %313 = vmatprep.subr.bf16.mxu0 0
        %314 = vmatpush1.bf16.msra.mxu0 0
        %315 = vmatprep.subr.bf16.mxu0 0
        %316 = vmatpush1.bf16.msra.mxu0 0
        %317 = vmatprep.subr.bf16.mxu0 0
        %318 = vmatpush1.bf16.msra.mxu0 0
        %319 = vmatprep.subr.bf16.mxu0 0
        %320 = vmatpush1.bf16.msra.mxu0 0
        %321 = vmatprep.subr.bf16.mxu0 0
        %322 = vmatpush1.bf16.msra.mxu0 0
        %323 = vmatprep.subr.bf16.mxu0 0
        %324 = vmatpush1.bf16.msra.mxu0 0
        %325 = vmatprep.subr.bf16.mxu0 0
        %326 = vmatpush1.bf16.msra.mxu0 0
        %327 = vmatprep.subr.bf16.mxu0 0
        %328 = vmatpush1.bf16.msra.mxu0 0
        %329 = vmatprep.subr.bf16.mxu0 0
        %330 = vmatpush1.bf16.msra.mxu0 0
        %331 = vmatprep.subr.bf16.mxu0 0
        %332 = vmatpush1.bf16.msra.mxu0 0
        %333 = vmatprep.subr.bf16.mxu0 0
        %334 = vmatpush1.bf16.msra.mxu0 0
        %335 = vmatprep.subr.bf16.mxu0 0
        %336 = vmatpush1.bf16.msra.mxu0 0
        %337 = vmatprep.subr.bf16.mxu0 0
        %338 = vmatpush1.bf16.msra.mxu0 0
        %339 = vmatprep.subr.bf16.mxu0 0
        %340 = vmatpush1.bf16.msra.mxu0 0
        %341 = vmatprep.mubr.bf16.mxu0 0
        %342 = vmatmul.mubr.bf16.gmra.mrb[0].mxu0 %v307
        %v343 = vpop.f32.mrb[0].mxu0
        %v344 = vadd.f32 0.0, %v343
        %v345 = vpop.f32.mrb[0].mxu0
        %v346 = vpop.f32.mrb[0].mxu0
        %v347 = vadd.f32 0.0, %v346
        %v348 = vpop.f32.mrb[0].mxu0
        %349 = vdwg.mxu0
        %v350 = vmul.f32 %v344, 0.0010405828
        %v351 = vmul.f32 %v347, 0.0010405828
        %v352 = vld [vmem:[%s202] sm:$0xff]
        %v353 = vld [vmem:[%s202 + $0x8] sm:$0xff]
        %v354 = vunpack.c.l.bf16 %v244
        %v355 = vunpack.c.l.bf16 %v245
        %v356 = vsub.f32 %v350, %v354
        %v357 = vsub.f32 %v351, %v355
        %v358 = vand.u32 2147483647, %v356
        %v359 = vand.u32 2147483647, %v357
        %v360 = vmul.f32 %v358, 5.0
        %v361 = vmul.f32 %v359, 5.0
        %v362 = vadd.f32 %v360, 1.0
        %v363 = vadd.f32 %v361, 1.0
        %v364 = vand.u32 2147483647, %v352
        %v365 = vand.u32 2147483647, %v353
        %v366 = vsub.f32 0.0, %v364
        %v367 = vsub.f32 0.0, %v365
        %v368 = vmul.f32 %v366, 1.442695
        %v369 = vpow.pop %v368
        %v370 = vmul.f32 %v367, 1.442695
        %v371 = vpow.pop %v370
        %v372 = vmax.f32 %v352, 0.0
        %v373 = vmax.f32 %v353, 0.0
        %v374 = vmul.f32 %v352, %v354
        %v375 = vmul.f32 %v353, %v355
        %v376 = vsub.f32 %v372, %v374
        %v377 = vsub.f32 %v373, %v375
        %v378 = vadd.f32 %v369, 1.0
        %v379 = vadd.f32 %v371, 1.0
        %v380 = vlog2.pop %v378
        %v381 = vmul.f32 %v380, 0.6931472
        %v382 = vlog2.pop %v379
        %v383 = vmul.f32 %v382, 0.6931472
        %v384 = vadd.f32 %v376, %v381
        %v385 = vadd.f32 %v377, %v383
        %v386 = vrcp.pop %v378
        %v387 = vrcp.pop %v379
        %v388 = vmul.f32 %v378, %v386
        %v389 = vmul.f32 %v379, %v387
        %v390 = vsub.f32 2.0, %v388
        %v391 = vsub.f32 2.0, %v389
        %v392 = vmul.f32 %v386, %v390
        %v393 = vmul.f32 %v387, %v391
        %vm394 = vcmp.ge.f32.partialorder %v352, 0.0
        %vm395 = vcmp.ge.f32.partialorder %v353, 0.0
        %v396 = vmul.f32 %v369, %v392
        %v397 = vmul.f32 %v371, %v393
        %v398 = vsel %vm394, %v392, %v396
        %v399 = vsel %vm395, %v393, %v397
        %vm400 = vcmp.gt.f32.partialorder %v354, 0.5
        %vm401 = vcmp.gt.f32.partialorder %v355, 0.5
        %v402 = vsub.f32 1.0, %v398
        %v403 = vsub.f32 1.0, %v399
        %v404 = vsel %vm400, %v398, %v402
        %v405 = vsel %vm401, %v399, %v403
        %v406 = vsub.f32 1.0, %v404
        %v407 = vsub.f32 1.0, %v405
        %v408 = vmul.f32 %v406, %v406
        %v409 = vmul.f32 %v407, %v407
        %v410 = vmul.f32 %v408, 0.25
        %v411 = vmul.f32 %v409, 0.25
        %v412 = vmul.f32 %v410, %v384
        %v413 = vmul.f32 %v411, %v385
        %v414 = vmul.f32 %v398, %v362
        %v415 = vmul.f32 %v399, %v363
        %v416 = vmul.f32 %v354, %v362
        %v417 = vmul.f32 %v355, %v363
        %v418 = vsel %vm259, %v362, 0.0
        %v419 = vsel %vm259, %v363, 0.0
        %v420 = vadd.f32 %v418, %v419
        %421 = vadd.xlane.f32.xlu0 %v420
        %v422 = vpop.xlane.xlu0 %421
        %v423 = vrot.slane %v422, 4
        %v424 = vadd.f32 %v422, %v423
        %v425 = vrot.slane %v424, 2
        %v426 = vadd.f32 %v424, %v425
        %v427 = vrot.slane %v426, 1
        %v428 = vadd.f32 %v426, %v427
        %s429 = vtos %v428
        %v430 = vstv %s429
        %v431 = vadd.f32 %v430, 0.0
        %v432 = vmul.f32 %v412, %v362
        %v433 = vmul.f32 %v413, %v363
        %v434 = vsel %vm259, %v432, 0.0
        %v435 = vsel %vm259, %v433, 0.0
        %v436 = vadd.f32 %v434, %v435
        %437 = vadd.xlane.f32.xlu0 %v436
        %v438 = vpop.xlane.xlu0 %437
        %v439 = vrot.slane %v438, 4
        %v440 = vadd.f32 %v438, %v439
        %v441 = vrot.slane %v440, 2
        %v442 = vadd.f32 %v440, %v441
        %v443 = vrot.slane %v442, 1
        %v444 = vadd.f32 %v442, %v443
        %s445 = vtos %v444
        %v446 = vstv %s445
        %v447 = vadd.f32 %v446, 0.0
        %v448 = vmul.f32 %v414, %v354
        %v449 = vmul.f32 %v415, %v355
        %v450 = vsel %vm259, %v448, 0.0
        %v451 = vsel %vm259, %v449, 0.0
        %v452 = vadd.f32 %v450, %v451
        %453 = vadd.xlane.f32.xlu0 %v452
        %v454 = vpop.xlane.xlu0 %453
        %v455 = vrot.slane %v454, 4
        %v456 = vadd.f32 %v454, %v455
        %v457 = vrot.slane %v456, 2
        %v458 = vadd.f32 %v456, %v457
        %v459 = vrot.slane %v458, 1
        %v460 = vadd.f32 %v458, %v459
        %s461 = vtos %v460
        %v462 = vstv %s461
        %v463 = vadd.f32 %v462, 0.0
        %v464 = vsel %vm259, %v414, 0.0
        %v465 = vsel %vm259, %v415, 0.0
        %v466 = vadd.f32 %v464, %v465
        %467 = vadd.xlane.f32.xlu0 %v466
        %v468 = vpop.xlane.xlu0 %467
        %v469 = vrot.slane %v468, 4
        %v470 = vadd.f32 %v468, %v469
        %v471 = vrot.slane %v470, 2
        %v472 = vadd.f32 %v470, %v471
        %v473 = vrot.slane %v472, 1
        %v474 = vadd.f32 %v472, %v473
        %s475 = vtos %v474
        %v476 = vstv %s475
        %v477 = vadd.f32 %v476, 0.0
        %v478 = vsel %vm259, %v416, 0.0
        %v479 = vsel %vm259, %v417, 0.0
        %v480 = vadd.f32 %v478, %v479
        %481 = vadd.xlane.f32.xlu0 %v480
        %v482 = vpop.xlane.xlu0 %481
        %v483 = vrot.slane %v482, 4
        %v484 = vadd.f32 %v482, %v483
        %v485 = vrot.slane %v484, 2
        %v486 = vadd.f32 %v484, %v485
        %v487 = vrot.slane %v486, 1
        %v488 = vadd.f32 %v486, %v487
        %s489 = vtos %v488
        %v490 = vstv %s489
        %v491 = vadd.f32 %v490, 0.0
        %v492 = vrcp.pop %v431
        %v493 = vmul.f32 %v447, %v492
        %v494 = vadd.f32 %v477, %v491
        %v495 = vadd.f32 %v463, 1.0
        %v496 = vsub.f32 %v494, %v463
        %v497 = vadd.f32 %v496, 1.0
        %v498 = vrcp.pop %v497
        %v499 = vmul.f32 %v495, %v498
        %v500 = vsub.f32 1.0, %v499
        %v501 = vadd.f32 %v493, %v500
        %502 = vst [vmem:[%s242] sm:$0xff] %v501
        %s503 = sand.u32 %s104, 1
        %s504 = scalar_lea.sflag [#allocation4], %s503
        %s505 = sand.u32 %s104, 1
        %s506 = smul.addr %s505, 8
        %s507 = scalar_lea.vmem [#allocation8], %s506
        // Predicated region
        $region45: #{tpu_custom_call.1} parent=31 // pred_check
          %p508 = pneg %p114
        $region46: #{tpu_custom_call.1} parent=31 // pred_check_branch
          %510 = sbr.rel (%p508) target = $region48
        $region47: #{tpu_custom_call.1} parent=31 // pred_region
          %s512 = ssub.s32 128, 128
          %513 = vsyncadd %s504, %s512
          %s514 = smul.addr %s23, 128
          %s515 = scalar_lea.hbm %s3, %s514
          %s517 = sshll.u32 %s507, 4
          %s518 = int_to_ptr.vmem [resolvable:$true] %s517
          %520 = dma.vmem_to_hbm [thread:$0]  %s518, 128, %s515, %s504
        $region48: #{tpu_custom_call.1} parent=31 // pred_fallthru
          _
      $region32: #{tpu_custom_call.1} parent=5 // pred_fallthru
        _
      %p521 = scmp.le.s32.totalorder 2, %s18
      // Predicated region
      $region49: #{tpu_custom_call.1} parent=5 // pred_check
        %p522 = pneg %p521
      $region50: #{tpu_custom_call.1} parent=5 // pred_check_branch
        %524 = sbr.rel (%p522) target = $region52
      $region51: #{tpu_custom_call.1} parent=5 // pred_region
        %s525 = ssub.s32 %s18, 2
        // Predicated region
        $region53: #{tpu_custom_call.1} parent=51 // pred_check
          %p526 = pneg %p120
        $region54: #{tpu_custom_call.1} parent=51 // pred_check_branch
          %528 = sbr.rel (%p526) target = $region56
        $region55: #{tpu_custom_call.1} parent=51 // pred_region
          %s529 = sand.u32 %s105, 1
          %s530 = scalar_lea.sflag [#allocation4], %s529
          %s531 = sand.u32 %s105, 1
          %s532 = smul.addr %s531, 8
          %s533 = scalar_lea.vmem [#allocation8], %s532
          %534 = dma.done %s530, 128
        $region56: #{tpu_custom_call.1} parent=51 // pred_fallthru
          _
      $region52: #{tpu_custom_call.1} parent=5 // pred_fallthru
        _
    $region6: #{tpu_custom_call.1} parent=1 // loop_footer
      %s22 = sadd.s32 1, %s18
    $region7: #{tpu_custom_call.1} parent=1 // loop_footer_branch
      %17 = sbr.rel target = $region3
    $region8: #{tpu_custom_call.1} parent=1 // loop_exit
      _
    %535 = vsyncpa [#allocation3], 1
    %s536 = scalar_lea.sflag [#allocation3], 1
    %537 = vsyncpa %s536, 1
    %538 = vsyncpa [#allocation6], 1
    %s539 = scalar_lea.sflag [#allocation6], 1
    %540 = vsyncpa %s539, 1
    %541 = vsyncpa [#allocation4], 1
    %s542 = scalar_lea.sflag [#allocation4], 1
    %543 = vsyncpa %s542, 1

</llo_original>
